<compile_context>
chip_gen: v7x
topology: tpu7x:2x2x1
jax: 0.10.0
libtpu: 0.0.40
codegen_flags: <defaults>
</compile_context>

<pallas_src>
import functools

import jax
import jax.numpy as jnp
from jax import lax
from jax.experimental import pallas as pl
from jax.experimental.pallas import tpu as pltpu


def _round_up(x, m):
    return (x + m - 1) // m * m


def _block_plan(n, t, h, itemsize):
    """Choose (sentences-per-grid-block, sentences-per-in-kernel-chunk, ...)."""
    per_sent = t * h * itemsize
    # In-kernel chunk: ~128 KiB of features -> ~32 vregs live, no spills.
    cs = ((128 * 1024) // max(per_sent, 1)) // 8 * 8
    cs = max(8, cs)
    cs = min(cs, _round_up(n, 8))
    # Grid block: ~2 MiB of features per step (double-buffered by Pallas).
    n_chunks = max(1, (2 * 1024 * 1024) // (cs * per_sent))
    ns = cs * n_chunks
    ns = min(ns, _round_up(n, cs))            # don't exceed the (padded) problem
    if n >= 2 * cs:                           # keep >=2 grid steps when possible
        ns = min(ns, _round_up((n + 1) // 2, cs))
    ns = max(ns, cs)
    n_chunks = ns // cs
    n_pad = _round_up(n, ns)
    return ns, cs, n_chunks, n_pad


def _agg_kernel(w_ref, f_ref, o_ref, *, cs, n_chunks):
    """Attention-pool `n_chunks * cs` sentences resident in VMEM.

    w_ref : (1, H)      learned scoring vector (constant across the grid)
    f_ref : (NS, T, H)  token features for NS = n_chunks * cs sentences
    o_ref : (NS, H)     pooled sentence representations
    """
    # Hoisted out of the chunk loop: load + broadcast-shape w once.
    w = w_ref[...].astype(jnp.float32).reshape(1, 1, -1)        # (1, 1, H)

    def body(c, carry):
        i0 = pl.multiple_of(c * cs, cs)
        f = f_ref[pl.ds(i0, cs)].astype(jnp.float32)            # (cs, T, H)
        # Token scores on the VPU (keep the MXU out of this mem-bound kernel).
        scores = jnp.sum(f * w, axis=-1, keepdims=True)         # (cs, T, 1)
        # Numerically-stable softmax over the token (sublane) axis.
        m = jnp.max(scores, axis=1, keepdims=True)              # (cs, 1, 1)
        e = jnp.exp(scores - m)                                 # (cs, T, 1)
        denom = jnp.sum(e, axis=1, keepdims=True)               # (cs, 1, 1)
        inv = pl.reciprocal(denom, approx=True)                 # EUP slot
        inv = inv * (2.0 - denom * inv)                         # one Newton step
        p = e * inv                                             # (cs, T, 1)
        # Weighted sum of token features.
        o_ref[pl.ds(i0, cs)] = jnp.sum(p * f, axis=1).astype(o_ref.dtype)
        return carry

    lax.fori_loop(0, n_chunks, body, 0)


def sentence_aggregate(features, w):
    """features: [B, S, T, H], w: [H] -> [B, S, H] float32 (attention pooling)."""
    B, S, T, H = features.shape
    N = B * S
    ns, cs, n_chunks, n_pad = _block_plan(N, T, H, features.dtype.itemsize)

    flat = features.reshape(N, T, H)
    if n_pad != N:
        # Zero-padded sentences produce a uniform softmax over zero features
        # (-> zero output); they are sliced off below.
        flat = jnp.pad(flat, ((0, n_pad - N), (0, 0), (0, 0)))
    w2d = w.reshape(1, H)

    kernel = functools.partial(_agg_kernel, cs=cs, n_chunks=n_chunks)
    out = pl.pallas_call(
        kernel,
        out_shape=jax.ShapeDtypeStruct((n_pad, H), jnp.float32),
        grid_spec=pltpu.PrefetchScalarGridSpec(
            num_scalar_prefetch=0,
            grid=(n_pad // ns,),
            in_specs=[
                pl.BlockSpec((1, H), lambda i: (0, 0)),          # w: resident
                pl.BlockSpec((ns, T, H), lambda i: (i, 0, 0)),   # NS sentences/step
            ],
            out_specs=pl.BlockSpec((ns, H), lambda i: (i, 0)),
        ),
        compiler_params=pltpu.CompilerParams(
            dimension_semantics=("parallel",)),
    )(w2d, flat)
    return out[:N].reshape(B, S, H)


def permutator_v2_forward(current_permutations, features, w):
    """PermutatorV2.forward stand-in.

    current_permutations : [P, K] int32 sentence indices per permutation
    features             : [B, S, T, H] token features
    w                    : [H] aggregator scoring vector
    returns              : [B, P, H] permutation representations
    """
    sent_reps = sentence_aggregate(features, w)            # [B, S, H]  (Pallas)
    # Glue: gather sentence reps for every permutation and sum the hops.
    # TODO(synk): could be fused via PrefetchScalarGridSpec-driven gather; only
    #             worthwhile when P*K*H is comparable to B*S*T*H.
    gathered = sent_reps[:, current_permutations, :]        # [B, P, K, H]
    return jnp.sum(gathered, axis=2)                        # [B, P, H]


def permutator_v2_forward_query(features, w):
    """PermutatorV2.forward_query stand-in: aggregate each sentence alone."""
    return sentence_aggregate(features, w)                  # [B, S, H]


if __name__ == "__main__":
    key = jax.random.PRNGKey(0)
    k_feat, k_w, k_feat2 = jax.random.split(key, 3)

    # Small shapes consistent with the module.
    B, S, T, H = 2, 4, 8, 32          # batch, sentences, tokens, hidden
    P, K = 6, 2                        # permutations, hops per permutation

    features = jax.random.normal(k_feat, (B, S, T, H), dtype=jnp.float32)
    w = jax.random.normal(k_w, (H,), dtype=jnp.float32)
    perms = jnp.array(
        [[0, 1], [1, 0], [0, 2], [2, 3], [3, 1], [2, 0]], dtype=jnp.int32)

    out = jax.block_until_ready(permutator_v2_forward(perms, features, w))
    assert out.shape == (B, P, H)

    # Pure-JAX reference of the Pallas hot path + glue.
    scores = jnp.einsum("bsth,h->bst", features, w)
    p_ref = jax.nn.softmax(scores, axis=-1)
    sent_ref = jnp.einsum("bst,bsth->bsh", p_ref, features)
    ref = jnp.sum(sent_ref[:, perms, :], axis=2)
    assert jnp.allclose(out, ref, atol=1e-4, rtol=1e-4)

    q_out = jax.block_until_ready(permutator_v2_forward_query(features, w))
    assert q_out.shape == (B, S, H)
    assert jnp.allclose(q_out, sent_ref, atol=1e-4, rtol=1e-4)

    # Larger case: exercises multi-step grid, in-kernel chunk loop and padding.
    B2, S2 = 4, 80                     # 320 sentences -> 2 grid steps, padded
    features2 = jax.random.normal(k_feat2, (B2, S2, T, H), dtype=jnp.float32)
    q2 = jax.block_until_ready(permutator_v2_forward_query(features2, w))
    scores2 = jnp.einsum("bsth,h->bst", features2, w)
    ref2 = jnp.einsum("bst,bsth->bsh", jax.nn.softmax(scores2, axis=-1), features2)
    assert q2.shape == (B2, S2, H)
    assert jnp.allclose(q2, ref2, atol=1e-4, rtol=1e-4)

    print("KERNEL_OK")
</pallas_src>

<mosaic_0001>
module attributes {stable_mosaic.version = 11 : i64} {
  func.func @_agg_kernel(%arg0: i32, %arg1: memref<1x32xf32, #tpu.memory_space<vmem>>, %arg2: memref<8x8x32xf32, #tpu.memory_space<vmem>>, %arg3: memref<8x32xf32, #tpu.memory_space<vmem>>) attributes {dimension_semantics = [#tpu.dimension_semantics<parallel>], iteration_bounds = array<i64: 1>, scalar_prefetch = 0 : i64, scratch_operands = 0 : i64, tpu.core_type = #tpu.core_type<tc>, window_params = [{pipeline_mode = #tpu.pipeline_mode<synchronous>, transform_indices = @transform_0, window_bounds = array<i64: 1, 32>}, {transform_indices = @transform_1, window_bounds = array<i64: 8, 8, 32>}, {transform_indices = @transform_2, window_bounds = array<i64: 8, 32>}]} {
    %c0 = arith.constant 0 : index
    %c0_0 = arith.constant 0 : index
    %0 = vector.load %arg1[%c0, %c0_0] : memref<1x32xf32, #tpu.memory_space<vmem>>, vector<1x32xf32>
    %1 = vector.shape_cast %0 : vector<1x32xf32> to vector<1x1x32xf32>
    %c0_i32 = arith.constant 0 : i32
    %c8_i32 = arith.constant 8 : i32
    %2 = arith.muli %c0_i32, %c8_i32 : i32
    %3 = tpu.assume_multiple %2, 8 : i32
    %4 = arith.index_cast %3 : i32 to index
    %c0_1 = arith.constant 0 : index
    %c0_2 = arith.constant 0 : index
    %5 = vector.load %arg2[%4, %c0_1, %c0_2] : memref<8x8x32xf32, #tpu.memory_space<vmem>>, vector<8x8x32xf32>
    %6 = vector.broadcast %1 : vector<1x1x32xf32> to vector<8x8x32xf32>
    %7 = arith.mulf %5, %6 : vector<8x8x32xf32>
    %cst = arith.constant dense<0.000000e+00> : vector<8x8xf32>
    %8 = vector.multi_reduction <add>, %7, %cst [2] : vector<8x8x32xf32> to vector<8x8xf32>
    %9 = vector.shape_cast %8 : vector<8x8xf32> to vector<8x8x1xf32>
    %cst_3 = arith.constant dense<0xFF800000> : vector<8x1xf32>
    %10 = vector.multi_reduction <maximumf>, %9, %cst_3 [1] : vector<8x8x1xf32> to vector<8x1xf32>
    %11 = vector.shape_cast %10 : vector<8x1xf32> to vector<8x1x1xf32>
    %12 = vector.broadcast %11 : vector<8x1x1xf32> to vector<8x8x1xf32>
    %13 = arith.subf %9, %12 : vector<8x8x1xf32>
    %14 = math.exp %13 : vector<8x8x1xf32>
    %cst_4 = arith.constant dense<0.000000e+00> : vector<8x1xf32>
    %15 = vector.multi_reduction <add>, %14, %cst_4 [1] : vector<8x8x1xf32> to vector<8x1xf32>
    %16 = vector.shape_cast %15 : vector<8x1xf32> to vector<8x1x1xf32>
    %17 = tpu.reciprocal %16 {approx = true} : vector<8x1x1xf32> -> vector<8x1x1xf32>
    %18 = arith.mulf %16, %17 : vector<8x1x1xf32>
    %cst_5 = arith.constant 2.000000e+00 : f32
    %19 = vector.broadcast %cst_5 : f32 to vector<8x1x1xf32>
    %20 = arith.subf %19, %18 : vector<8x1x1xf32>
    %21 = arith.mulf %17, %20 : vector<8x1x1xf32>
    %22 = vector.broadcast %21 : vector<8x1x1xf32> to vector<8x8x1xf32>
    %23 = arith.mulf %14, %22 : vector<8x8x1xf32>
    %24 = vector.broadcast %23 : vector<8x8x1xf32> to vector<8x8x32xf32>
    %25 = arith.mulf %24, %5 : vector<8x8x32xf32>
    %cst_6 = arith.constant dense<0.000000e+00> : vector<8x32xf32>
    %26 = vector.multi_reduction <add>, %25, %cst_6 [1] : vector<8x8x32xf32> to vector<8x32xf32>
    %27 = arith.index_cast %3 : i32 to index
    %c0_7 = arith.constant 0 : index
    %28 = vector.load %arg3[%27, %c0_7] : memref<8x32xf32, #tpu.memory_space<vmem>>, vector<8x32xf32>
    tpu.vector_store %arg3[%27, %c0_7], %26 {strides = array<i32>} : memref<8x32xf32, #tpu.memory_space<vmem>>, vector<8x32xf32>,
    %c1_i32 = arith.constant 1 : i32
    return
  }
  func.func @transform_0(%arg0: i32) -> (i32, i32) {
    %c0_i32 = arith.constant 0 : i32
    %c0_i32_0 = arith.constant 0 : i32
    %c0_i32_1 = arith.constant 0 : i32
    return %c0_i32, %c0_i32_0 : i32, i32
  }
  func.func @transform_1(%arg0: i32) -> (i32, i32, i32) {
    %c0_i32 = arith.constant 0 : i32
    %c0_i32_0 = arith.constant 0 : i32
    %c0_i32_1 = arith.constant 0 : i32
    return %arg0, %c0_i32, %c0_i32_0 : i32, i32, i32
  }
  func.func @transform_2(%arg0: i32) -> (i32, i32) {
    %c0_i32 = arith.constant 0 : i32
    %c0_i32_0 = arith.constant 0 : i32
    return %arg0, %c0_i32 : i32, i32
  }
}

</mosaic_0001>

<llo_original>
// kernel: tpu_custom_call.1
$region0: #{tpu_custom_call.1}
  #allocation0 [shape = 'u32[]', space=smem, size = 0x4, offset = 0x4, fixed_abs, tag = 'smem constant byte address 0x4 - core index']
  #allocation1 [shape = 'u32[144,128]{1,0:T(1,128)}', space=vmem, size = 0x12000, scoped, tag = 'internal scratch']
  %s0 = inlined_call_operand.hbm [shape: f32[1,32], index: 0, kind: input, shape index: {}]
  %s1 = inlined_call_operand.hbm [shape: f32[8,8,32], index: 1, kind: input, shape index: {}]
  %s2 = inlined_call_operand.hbm [shape: f32[8,32], index: 2, kind: output, shape index: {}]
  %s3 = sld [smem:[#allocation0]]
  $region26: #{tpu_custom_call.1} parent=0
    _
  %s5 = ssub.s32 1, %s3
  %s6 = scalar_select 0, %s5, %s3
  $region1: #{tpu_custom_call.1} parent=0
    #allocation2 [shape = 'u8[512]{0}', space=vmem, size = 0x400, scoped, tag = 'input window, operand 0, single buffered']
    #allocation3 [shape = 's32[1]{0}', space=sflag, size = 0x4, scoped, tag = 'scoped memory for tpu_custom_call.1']
    #allocation4 [shape = 's32[1]{0}', space=sflag, size = 0x4, scoped, tag = 'scoped memory for tpu_custom_call.1']
    #allocation5 [shape = 'u8[32768]{0}', space=vmem, size = 0x8000, scoped, tag = 'input window, operand 1, single buffered']
    #allocation6 [shape = 's32[1]{0}', space=sflag, size = 0x4, scoped, tag = 'scoped memory for tpu_custom_call.1']
    #allocation7 [shape = 'u8[4096]{0}', space=vmem, size = 0x1000, scoped, tag = 'output window, operand 0, single buffered']
    %7 = vsyncpa [#allocation3], 0
    %8 = vsyncpa [#allocation6], 0
    %9 = vsyncpa [#allocation4], 0
    // Predicated region
    $region2: #{tpu_custom_call.1} parent=1 // pred_check
      _
    $region3: #{tpu_custom_call.1} parent=1 // pred_check_branch
      %11 = sbr.rel (0) target = $region5
    $region4: #{tpu_custom_call.1} parent=1 // pred_region
      %s13 = ssub.s32 16, 16
      %14 = vsyncadd [#allocation3], %s13
      %s16 = sshll.u32 [#allocation2], 4
      %s17 = int_to_ptr.vmem [resolvable:$true] %s16
      %19 = dma.hbm_to_vmem [thread:$0]  %s0, 16, %s17, [#allocation3]
    $region5: #{tpu_custom_call.1} parent=1 // pred_fallthru
      _
    // Predicated region
    $region6: #{tpu_custom_call.1} parent=1 // pred_check
      _
    $region7: #{tpu_custom_call.1} parent=1 // pred_check_branch
      %21 = sbr.rel (0) target = $region9
    $region8: #{tpu_custom_call.1} parent=1 // pred_region
      %s23 = ssub.s32 1024, 1024
      %24 = vsyncadd [#allocation6], %s23
      %s25 = sshll.u32 [#allocation5], 4
      %s26 = int_to_ptr.vmem [resolvable:$true] %s25
      %31 = dma.hbm_to_vmem [thread:$0]  %s1, 1024, %s26, [#allocation6], 128, 128, 8
    $region9: #{tpu_custom_call.1} parent=1 // pred_fallthru
      _
    // Predicated region
    $region10: #{tpu_custom_call.1} parent=1 // pred_check
      _
    $region11: #{tpu_custom_call.1} parent=1 // pred_check_branch
      %33 = sbr.rel (0) target = $region13
    $region12: #{tpu_custom_call.1} parent=1 // pred_region
      %34 = dma.done [#allocation3], 16
    $region13: #{tpu_custom_call.1} parent=1 // pred_fallthru
      _
    // Predicated region
    $region14: #{tpu_custom_call.1} parent=1 // pred_check
      _
    $region15: #{tpu_custom_call.1} parent=1 // pred_check_branch
      %36 = sbr.rel (0) target = $region17
    $region16: #{tpu_custom_call.1} parent=1 // pred_region
      %37 = dma.done [#allocation6], 1024
    $region17: #{tpu_custom_call.1} parent=1 // pred_fallthru
      _
    %v38 = vld [vmem:[#allocation2] sm:$0x1]
    %s39 = smul.u32 0, 8
    %s40 = scalar_lea.vmem [#allocation5], %s39
    %v41 = vld [vmem:[%s40] sm:$0xff]
    %v42 = vld [vmem:[%s40 + $0x8] sm:$0xff]
    %v43 = vld [vmem:[%s40 + $0x10] sm:$0xff]
    %v44 = vld [vmem:[%s40 + $0x18] sm:$0xff]
    %v45 = vld [vmem:[%s40 + $0x20] sm:$0xff]
    %v46 = vld [vmem:[%s40 + $0x28] sm:$0xff]
    %v47 = vld [vmem:[%s40 + $0x30] sm:$0xff]
    %v48 = vld [vmem:[%s40 + $0x38] sm:$0xff]
    %v50 = vlaneseq
    %v51 = vshrl.u32 %v50, 7
    %v52 = vsub.s32 0, %v51
    %v53 = vrot.slane %v38, %v52
    %v55 = vmul.f32 %v41, %v53
    %v56 = vmul.f32 %v42, %v53
    %v57 = vmul.f32 %v43, %v53
    %v58 = vmul.f32 %v44, %v53
    %v59 = vmul.f32 %v45, %v53
    %v60 = vmul.f32 %v46, %v53
    %v61 = vmul.f32 %v47, %v53
    %v62 = vmul.f32 %v48, %v53
    %vm63 = vcmask 261120
    %v64 = vsel %vm63, %v55, 0.0
    %65 = vadd.xlane.f32.xlu0 %v64
    %v66 = vpop.xlane.xlu0 %65
    %v67 = vsel %vm63, %v56, 0.0
    %68 = vadd.xlane.f32.xlu0 %v67
    %v69 = vpop.xlane.xlu0 %68
    %v70 = vsel %vm63, %v57, 0.0
    %71 = vadd.xlane.f32.xlu0 %v70
    %v72 = vpop.xlane.xlu0 %71
    %v73 = vsel %vm63, %v58, 0.0
    %74 = vadd.xlane.f32.xlu0 %v73
    %v75 = vpop.xlane.xlu0 %74
    %v76 = vsel %vm63, %v59, 0.0
    %77 = vadd.xlane.f32.xlu0 %v76
    %v78 = vpop.xlane.xlu0 %77
    %v79 = vsel %vm63, %v60, 0.0
    %80 = vadd.xlane.f32.xlu0 %v79
    %v81 = vpop.xlane.xlu0 %80
    %v82 = vsel %vm63, %v61, 0.0
    %83 = vadd.xlane.f32.xlu0 %v82
    %v84 = vpop.xlane.xlu0 %83
    %v85 = vsel %vm63, %v62, 0.0
    %86 = vadd.xlane.f32.xlu0 %v85
    %v87 = vpop.xlane.xlu0 %86
    %v88 = vrot.slane %v66, 4
    %v89 = vmax.f32 %v66, %v88
    %v90 = vrot.slane %v89, 2
    %v91 = vmax.f32 %v89, %v90
    %v92 = vrot.slane %v91, 1
    %v93 = vmax.f32 %v91, %v92
    %v94 = vrot.slane %v69, 4
    %v95 = vmax.f32 %v69, %v94
    %v96 = vrot.slane %v95, 2
    %v97 = vmax.f32 %v95, %v96
    %v98 = vrot.slane %v97, 1
    %v99 = vmax.f32 %v97, %v98
    %v100 = vrot.slane %v72, 4
    %v101 = vmax.f32 %v72, %v100
    %v102 = vrot.slane %v101, 2
    %v103 = vmax.f32 %v101, %v102
    %v104 = vrot.slane %v103, 1
    %v105 = vmax.f32 %v103, %v104
    %v106 = vrot.slane %v75, 4
    %v107 = vmax.f32 %v75, %v106
    %v108 = vrot.slane %v107, 2
    %v109 = vmax.f32 %v107, %v108
    %v110 = vrot.slane %v109, 1
    %v111 = vmax.f32 %v109, %v110
    %v112 = vrot.slane %v78, 4
    %v113 = vmax.f32 %v78, %v112
    %v114 = vrot.slane %v113, 2
    %v115 = vmax.f32 %v113, %v114
    %v116 = vrot.slane %v115, 1
    %v117 = vmax.f32 %v115, %v116
    %v118 = vrot.slane %v81, 4
    %v119 = vmax.f32 %v81, %v118
    %v120 = vrot.slane %v119, 2
    %v121 = vmax.f32 %v119, %v120
    %v122 = vrot.slane %v121, 1
    %v123 = vmax.f32 %v121, %v122
    %v124 = vrot.slane %v84, 4
    %v125 = vmax.f32 %v84, %v124
    %v126 = vrot.slane %v125, 2
    %v127 = vmax.f32 %v125, %v126
    %v128 = vrot.slane %v127, 1
    %v129 = vmax.f32 %v127, %v128
    %v130 = vrot.slane %v87, 4
    %v131 = vmax.f32 %v87, %v130
    %v132 = vrot.slane %v131, 2
    %v133 = vmax.f32 %v131, %v132
    %v134 = vrot.slane %v133, 1
    %v135 = vmax.f32 %v133, %v134
    %v136 = vsub.f32 %v66, %v93
    %v137 = vsub.f32 %v69, %v99
    %v138 = vsub.f32 %v72, %v105
    %v139 = vsub.f32 %v75, %v111
    %v140 = vsub.f32 %v78, %v117
    %v141 = vsub.f32 %v81, %v123
    %v142 = vsub.f32 %v84, %v129
    %v143 = vsub.f32 %v87, %v135
    %v144 = vmul.f32 %v136, 1.442695
    %v145 = vpow.pop %v144
    %v146 = vmul.f32 %v137, 1.442695
    %v147 = vpow.pop %v146
    %v148 = vmul.f32 %v138, 1.442695
    %v149 = vpow.pop %v148
    %v150 = vmul.f32 %v139, 1.442695
    %v151 = vpow.pop %v150
    %v152 = vmul.f32 %v140, 1.442695
    %v153 = vpow.pop %v152
    %v154 = vmul.f32 %v141, 1.442695
    %v155 = vpow.pop %v154
    %v156 = vmul.f32 %v142, 1.442695
    %v157 = vpow.pop %v156
    %v158 = vmul.f32 %v143, 1.442695
    %v159 = vpow.pop %v158
    %v160 = vrot.slane %v145, 4
    %v161 = vadd.f32 %v145, %v160
    %v162 = vrot.slane %v161, 2
    %v163 = vadd.f32 %v161, %v162
    %v164 = vrot.slane %v163, 1
    %v165 = vadd.f32 %v163, %v164
    %v166 = vrot.slane %v147, 4
    %v167 = vadd.f32 %v147, %v166
    %v168 = vrot.slane %v167, 2
    %v169 = vadd.f32 %v167, %v168
    %v170 = vrot.slane %v169, 1
    %v171 = vadd.f32 %v169, %v170
    %v172 = vrot.slane %v149, 4
    %v173 = vadd.f32 %v149, %v172
    %v174 = vrot.slane %v173, 2
    %v175 = vadd.f32 %v173, %v174
    %v176 = vrot.slane %v175, 1
    %v177 = vadd.f32 %v175, %v176
    %v178 = vrot.slane %v151, 4
    %v179 = vadd.f32 %v151, %v178
    %v180 = vrot.slane %v179, 2
    %v181 = vadd.f32 %v179, %v180
    %v182 = vrot.slane %v181, 1
    %v183 = vadd.f32 %v181, %v182
    %v184 = vrot.slane %v153, 4
    %v185 = vadd.f32 %v153, %v184
    %v186 = vrot.slane %v185, 2
    %v187 = vadd.f32 %v185, %v186
    %v188 = vrot.slane %v187, 1
    %v189 = vadd.f32 %v187, %v188
    %v190 = vrot.slane %v155, 4
    %v191 = vadd.f32 %v155, %v190
    %v192 = vrot.slane %v191, 2
    %v193 = vadd.f32 %v191, %v192
    %v194 = vrot.slane %v193, 1
    %v195 = vadd.f32 %v193, %v194
    %v196 = vrot.slane %v157, 4
    %v197 = vadd.f32 %v157, %v196
    %v198 = vrot.slane %v197, 2
    %v199 = vadd.f32 %v197, %v198
    %v200 = vrot.slane %v199, 1
    %v201 = vadd.f32 %v199, %v200
    %v202 = vrot.slane %v159, 4
    %v203 = vadd.f32 %v159, %v202
    %v204 = vrot.slane %v203, 2
    %v205 = vadd.f32 %v203, %v204
    %v206 = vrot.slane %v205, 1
    %v207 = vadd.f32 %v205, %v206
    %v208 = vrcp.pop %v165
    %v209 = vrcp.pop %v171
    %v210 = vrcp.pop %v177
    %v211 = vrcp.pop %v183
    %v212 = vrcp.pop %v189
    %v213 = vrcp.pop %v195
    %v214 = vrcp.pop %v201
    %v215 = vrcp.pop %v207
    %v216 = vmul.f32 %v165, %v208
    %v217 = vmul.f32 %v171, %v209
    %v218 = vmul.f32 %v177, %v210
    %v219 = vmul.f32 %v183, %v211
    %v220 = vmul.f32 %v189, %v212
    %v221 = vmul.f32 %v195, %v213
    %v222 = vmul.f32 %v201, %v214
    %v223 = vmul.f32 %v207, %v215
    %v224 = vsub.f32 2.0, %v216
    %v225 = vsub.f32 2.0, %v217
    %v226 = vsub.f32 2.0, %v218
    %v227 = vsub.f32 2.0, %v219
    %v228 = vsub.f32 2.0, %v220
    %v229 = vsub.f32 2.0, %v221
    %v230 = vsub.f32 2.0, %v222
    %v231 = vsub.f32 2.0, %v223
    %v232 = vmul.f32 %v208, %v224
    %v233 = vmul.f32 %v209, %v225
    %v234 = vmul.f32 %v210, %v226
    %v235 = vmul.f32 %v211, %v227
    %v236 = vmul.f32 %v212, %v228
    %v237 = vmul.f32 %v213, %v229
    %v238 = vmul.f32 %v214, %v230
    %v239 = vmul.f32 %v215, %v231
    %v240 = vmul.f32 %v145, %v232
    %v241 = vmul.f32 %v147, %v233
    %v242 = vmul.f32 %v149, %v234
    %v243 = vmul.f32 %v151, %v235
    %v244 = vmul.f32 %v153, %v236
    %v245 = vmul.f32 %v155, %v237
    %v246 = vmul.f32 %v157, %v238
    %v247 = vmul.f32 %v159, %v239
    %v248 = vmul.f32 %v240, %v41
    %v249 = vmul.f32 %v241, %v42
    %v250 = vmul.f32 %v242, %v43
    %v251 = vmul.f32 %v243, %v44
    %v252 = vmul.f32 %v244, %v45
    %v253 = vmul.f32 %v245, %v46
    %v254 = vmul.f32 %v246, %v47
    %v255 = vmul.f32 %v247, %v48
    %v256 = vsel %vm63, %v248, 0.0
    %v257 = vrot.slane %v256, 4
    %v258 = vadd.f32 %v256, %v257
    %v259 = vrot.slane %v258, 2
    %v260 = vadd.f32 %v258, %v259
    %v261 = vrot.slane %v260, 1
    %v262 = vadd.f32 %v260, %v261
    %v263 = vsel %vm63, %v249, 0.0
    %v264 = vrot.slane %v263, 4
    %v265 = vadd.f32 %v263, %v264
    %v266 = vrot.slane %v265, 2
    %v267 = vadd.f32 %v265, %v266
    %v268 = vrot.slane %v267, 1
    %v269 = vadd.f32 %v267, %v268
    %v270 = vsel %vm63, %v250, 0.0
    %v271 = vrot.slane %v270, 4
    %v272 = vadd.f32 %v270, %v271
    %v273 = vrot.slane %v272, 2
    %v274 = vadd.f32 %v272, %v273
    %v275 = vrot.slane %v274, 1
    %v276 = vadd.f32 %v274, %v275
    %v277 = vsel %vm63, %v251, 0.0
    %v278 = vrot.slane %v277, 4
    %v279 = vadd.f32 %v277, %v278
    %v280 = vrot.slane %v279, 2
    %v281 = vadd.f32 %v279, %v280
    %v282 = vrot.slane %v281, 1
    %v283 = vadd.f32 %v281, %v282
    %v284 = vsel %vm63, %v252, 0.0
    %v285 = vrot.slane %v284, 4
    %v286 = vadd.f32 %v284, %v285
    %v287 = vrot.slane %v286, 2
    %v288 = vadd.f32 %v286, %v287
    %v289 = vrot.slane %v288, 1
    %v290 = vadd.f32 %v288, %v289
    %v291 = vsel %vm63, %v253, 0.0
    %v292 = vrot.slane %v291, 4
    %v293 = vadd.f32 %v291, %v292
    %v294 = vrot.slane %v293, 2
    %v295 = vadd.f32 %v293, %v294
    %v296 = vrot.slane %v295, 1
    %v297 = vadd.f32 %v295, %v296
    %v298 = vsel %vm63, %v254, 0.0
    %v299 = vrot.slane %v298, 4
    %v300 = vadd.f32 %v298, %v299
    %v301 = vrot.slane %v300, 2
    %v302 = vadd.f32 %v300, %v301
    %v303 = vrot.slane %v302, 1
    %v304 = vadd.f32 %v302, %v303
    %v305 = vsel %vm63, %v255, 0.0
    %v306 = vrot.slane %v305, 4
    %v307 = vadd.f32 %v305, %v306
    %v308 = vrot.slane %v307, 2
    %v309 = vadd.f32 %v307, %v308
    %v310 = vrot.slane %v309, 1
    %v311 = vadd.f32 %v309, %v310
    %vm320 = vcmask 1041409
    %v321 = vsel %vm320, %v269, %v262
    %vm322 = vcmask 1042434
    %v323 = vsel %vm322, %v276, %v321
    %vm324 = vcmask 1043459
    %v325 = vsel %vm324, %v283, %v323
    %vm326 = vcmask 1044484
    %v327 = vsel %vm326, %v290, %v325
    %vm328 = vcmask 1045509
    %v329 = vsel %vm328, %v297, %v327
    %vm330 = vcmask 1046534
    %v331 = vsel %vm330, %v304, %v329
    %vm332 = vcmask 1047559
    %v333 = vsel %vm332, %v311, %v331
    %335 = vst.msk [vmem:[#allocation7] sm:$0xff] %vm63, %v333
    // Predicated region
    $region18: #{tpu_custom_call.1} parent=1 // pred_check
      _
    $region19: #{tpu_custom_call.1} parent=1 // pred_check_branch
      %337 = sbr.rel (0) target = $region21
    $region20: #{tpu_custom_call.1} parent=1 // pred_region
      %s339 = ssub.s32 128, 128
      %340 = vsyncadd [#allocation4], %s339
      %s342 = sshll.u32 [#allocation7], 4
      %s343 = int_to_ptr.vmem [resolvable:$true] %s342
      %345 = dma.vmem_to_hbm [thread:$0]  %s343, 128, %s2, [#allocation4]
    $region21: #{tpu_custom_call.1} parent=1 // pred_fallthru
      _
    // Predicated region
    $region22: #{tpu_custom_call.1} parent=1 // pred_check
      _
    $region23: #{tpu_custom_call.1} parent=1 // pred_check_branch
      %347 = sbr.rel (0) target = $region25
    $region24: #{tpu_custom_call.1} parent=1 // pred_region
      %348 = dma.done [#allocation4], 128
    $region25: #{tpu_custom_call.1} parent=1 // pred_fallthru
      _
    %349 = vsyncpa [#allocation3], 1
    %350 = vsyncpa [#allocation6], 1
    %351 = vsyncpa [#allocation4], 1

</llo_original>
